<compile_context>
chip_gen: v5e
topology: v5e:2x2
jax: 0.10.0
libtpu: 0.0.40
codegen_flags: <defaults>
</compile_context>

<pallas_src>
import jax
import jax.numpy as jnp
from jax.experimental import pallas as pl
from jax.experimental.pallas import tpu as pltpu


def _attention_kernel(x_ref, w_ref, o_ref):
    """One batch element per grid step.

    x_ref: (T, C)     activations for this batch element (VMEM, batch squeezed)
    w_ref: (3, C, H)  stacked [Wq^T, Wk^T, Wv^T]; index_map is constant so the
                      tile stays resident in VMEM across the whole grid
    o_ref: (T, H)     this batch element's rows of the flat (B*T, H) output
    """
    T, C = x_ref.shape
    H = w_ref.shape[2]

    # MXU input dtype follows the prepared weight dtype (f32 by default,
    # bf16 if the caller prepared bf16 weights for v6e/v7x scale-up).
    mxu_dtype = w_ref.dtype
    x = x_ref[...].astype(mxu_dtype)

    # Three narrow (C, H) projections.  Leading-axis indexing of the stacked
    # weight is a free view — no lane slicing inside a vreg.
    q = jnp.dot(x, w_ref[0], preferred_element_type=jnp.float32)   # (T, H) f32
    k = jnp.dot(x, w_ref[1], preferred_element_type=jnp.float32)
    v = jnp.dot(x, w_ref[2], preferred_element_type=jnp.float32)

    # Scale q (T*H elems) rather than the (T, T) score matrix.
    # Module semantics: scale by C**-0.5 (embedding dim), NOT head_dim**-0.5.
    q = q * (jnp.float32(C) ** jnp.float32(-0.5))

    # Scores: contract the last dims of q and k directly — no materialized k.T.
    s = jnp.einsum('qh,kh->qk', q, k,
                   preferred_element_type=jnp.float32)              # (T, T)

    # Rank-2 causal (lower-triangular) mask built with 2D iotas.
    row = jax.lax.broadcasted_iota(jnp.int32, (T, T), 0)
    col = jax.lax.broadcasted_iota(jnp.int32, (T, T), 1)
    s = jnp.where(col <= row, s, -jnp.inf)

    # Numerically-stable softmax; exact divide, all math kept in f32
    # (v5e has no bf16 VALU/EUP).
    m = jnp.max(s, axis=-1, keepdims=True)
    p = jnp.exp(s - m)
    attn = p / jnp.sum(p, axis=-1, keepdims=True)

    # Weighted sum of values; MXU inputs in mxu_dtype, f32 accumulation.
    out = jnp.dot(attn.astype(mxu_dtype), v.astype(mxu_dtype),
                  preferred_element_type=jnp.float32)               # (T, H)
    o_ref[...] = out.astype(o_ref.dtype)


def prepare_attention_params(wq, wk, wv, mxu_dtype=jnp.float32):
    """One-time parameter prep (hoisted out of the per-forward path).

    wq/wk/wv: (head_dim, emb_dim) in PyTorch Linear layout (out, in).
    Returns a (3, C, H) stack of [Wq^T, Wk^T, Wv^T].  Pass
    mxu_dtype=jnp.bfloat16 at production scales on v6e/v7x.
    """
    return jnp.stack([wq.T, wk.T, wv.T], axis=0).astype(mxu_dtype)


def attention_forward(x, wqkv):
    """x: (B, T, C).  wqkv: (3, C, H) from prepare_attention_params."""
    B, T, C = x.shape
    H = wqkv.shape[2]

    cost = pl.CostEstimate(
        flops=2 * B * (3 * T * C * H + 2 * T * T * H),
        transcendentals=B * T * T,                           # exp in softmax
        bytes_accessed=(x.dtype.itemsize * B * T * C
                        + wqkv.dtype.itemsize * 3 * C * H
                        + x.dtype.itemsize * B * T * H),
    )

    out_flat = pl.pallas_call(
        _attention_kernel,
        out_shape=jax.ShapeDtypeStruct((B * T, H), x.dtype),
        grid_spec=pltpu.PrefetchScalarGridSpec(
            num_scalar_prefetch=0,
            grid=(B,),                                        # one step per batch
            in_specs=[
                # (1, T, C) block, batch dim squeezed out of the kernel ref.
                pl.BlockSpec((None, T, C), lambda b: (b, 0, 0)),
                # Whole stacked weight, constant index -> stays resident.
                pl.BlockSpec((3, C, H), lambda b: (0, 0, 0)),
            ],
            # Flat (B*T, H) output; each grid step owns rows [b*T, (b+1)*T).
            out_specs=pl.BlockSpec((T, H), lambda b: (b, 0)),
        ),
        compiler_params=pltpu.CompilerParams(
            dimension_semantics=("parallel",)),               # 2 TCs on v7x
        cost_estimate=cost,
    )(x, wqkv)
    return out_flat.reshape(B, T, H)


def attention_reference(x, wq, wk, wv):
    """Pure-JAX reference mirroring the PyTorch forward (eval mode)."""
    B, T, C = x.shape
    q = x @ wq.T
    k = x @ wk.T
    v = x @ wv.T
    scores = (q @ jnp.swapaxes(k, -2, -1)) * (C ** -0.5)
    mask = jnp.tril(jnp.ones((T, T), dtype=jnp.float32))
    scores = jnp.where(mask == 0, -jnp.inf, scores)
    attn = jax.nn.softmax(scores, axis=-1)
    return attn @ v


if __name__ == "__main__":
    # Small shapes consistent with the module:
    #   emb_dim=32, head_dim=16, context=8  -> x: (B=2, T=8, C=32)
    B, T, C, H = 2, 8, 32, 16

    key = jax.random.PRNGKey(0)
    kx, kq, kk, kv = jax.random.split(key, 4)
    x = jax.random.normal(kx, (B, T, C), dtype=jnp.float32)
    # Deterministic "Linear" weights in PyTorch layout (out_features, in_features).
    wq = jax.random.normal(kq, (H, C), dtype=jnp.float32) * (C ** -0.5)
    wk = jax.random.normal(kk, (H, C), dtype=jnp.float32) * (C ** -0.5)
    wv = jax.random.normal(kv, (H, C), dtype=jnp.float32) * (C ** -0.5)

    # One-time parameter prep (constant across forwards).
    wqkv = prepare_attention_params(wq, wk, wv)               # (3, C, H) f32

    out = attention_forward(x, wqkv)
    out = jax.block_until_ready(out)

    ref = attention_reference(x, wq, wk, wv)
    assert out.shape == (B, T, H), out.shape
    # Exact softmax divide + f32 MXU inputs -> tight tolerance restored.
    assert jnp.allclose(out, ref, atol=1e-5, rtol=1e-5), (
        float(jnp.max(jnp.abs(out - ref))))

    print("KERNEL_OK")
</pallas_src>

<mosaic_0001>
module attributes {stable_mosaic.version = 11 : i64} {
  func.func @_attention_kernel(%arg0: i32, %arg1: memref<1x8x32xf32, #tpu.memory_space<vmem>>, %arg2: memref<3x32x16xf32, #tpu.memory_space<vmem>>, %arg3: memref<8x16xf32, #tpu.memory_space<vmem>>) attributes {dimension_semantics = [#tpu.dimension_semantics<parallel>], iteration_bounds = array<i64: 2>, scalar_prefetch = 0 : i64, scratch_operands = 0 : i64, tpu.core_type = #tpu.core_type<tc>, window_params = [{transform_indices = @transform_0, window_bounds = array<i64: 1, 8, 32>}, {pipeline_mode = #tpu.pipeline_mode<synchronous>, transform_indices = @transform_1, window_bounds = array<i64: 3, 32, 16>}, {transform_indices = @transform_2, window_bounds = array<i64: 8, 16>}]} {
    %c0 = arith.constant 0 : index
    %c0_0 = arith.constant 0 : index
    %c0_1 = arith.constant 0 : index
    %0 = vector.load %arg1[%c0, %c0_0, %c0_1] : memref<1x8x32xf32, #tpu.memory_space<vmem>>, vector<1x8x32xf32>
    %1 = vector.shape_cast %0 : vector<1x8x32xf32> to vector<8x32xf32>
    %c0_2 = arith.constant 0 : index
    %c0_3 = arith.constant 0 : index
    %c0_4 = arith.constant 0 : index
    %2 = vector.load %arg2[%c0_2, %c0_3, %c0_4] : memref<3x32x16xf32, #tpu.memory_space<vmem>>, vector<1x32x16xf32>
    %3 = vector.shape_cast %2 : vector<1x32x16xf32> to vector<32x16xf32>
    %cst = arith.constant dense<0.000000e+00> : vector<8x16xf32>
    %4 = tpu.matmul %1, %3, %cst {dimension_numbers = #tpu.dot_dimension_numbers<[1], [0], [0], [1], [0, 0, 1, 1], [], []>} : vector<8x32xf32>, vector<32x16xf32>, vector<8x16xf32> -> vector<8x16xf32>
    %c1 = arith.constant 1 : index
    %c0_5 = arith.constant 0 : index
    %c0_6 = arith.constant 0 : index
    %5 = vector.load %arg2[%c1, %c0_5, %c0_6] : memref<3x32x16xf32, #tpu.memory_space<vmem>>, vector<1x32x16xf32>
    %6 = vector.shape_cast %5 : vector<1x32x16xf32> to vector<32x16xf32>
    %cst_7 = arith.constant dense<0.000000e+00> : vector<8x16xf32>
    %7 = tpu.matmul %1, %6, %cst_7 {dimension_numbers = #tpu.dot_dimension_numbers<[1], [0], [0], [1], [0, 0, 1, 1], [], []>} : vector<8x32xf32>, vector<32x16xf32>, vector<8x16xf32> -> vector<8x16xf32>
    %c2 = arith.constant 2 : index
    %c0_8 = arith.constant 0 : index
    %c0_9 = arith.constant 0 : index
    %8 = vector.load %arg2[%c2, %c0_8, %c0_9] : memref<3x32x16xf32, #tpu.memory_space<vmem>>, vector<1x32x16xf32>
    %9 = vector.shape_cast %8 : vector<1x32x16xf32> to vector<32x16xf32>
    %cst_10 = arith.constant dense<0.000000e+00> : vector<8x16xf32>
    %10 = tpu.matmul %1, %9, %cst_10 {dimension_numbers = #tpu.dot_dimension_numbers<[1], [0], [0], [1], [0, 0, 1, 1], [], []>} : vector<8x32xf32>, vector<32x16xf32>, vector<8x16xf32> -> vector<8x16xf32>
    %cst_11 = arith.constant 3.200000e+01 : f32
    %cst_12 = arith.constant -5.000000e-01 : f32
    %11 = math.powf %cst_11, %cst_12 : f32
    %12 = vector.broadcast %11 : f32 to vector<8x16xf32>
    %13 = arith.mulf %4, %12 : vector<8x16xf32>
    "tpu.trace_start"() <{level = 10 : i32, message = "qh,kh->qk"}> : () -> ()
    %cst_13 = arith.constant dense<0.000000e+00> : vector<8x8xf32>
    %14 = tpu.matmul %13, %7, %cst_13 {dimension_numbers = #tpu.dot_dimension_numbers<[1], [1], [0], [0], [0, 0, 1, 0], [], []>} : vector<8x16xf32>, vector<8x16xf32>, vector<8x8xf32> -> vector<8x8xf32>
    "tpu.trace_stop"() : () -> ()
    %15 = tpu.iota {dimensions = array<i32: 0>} : vector<8x8xi32>
    %16 = tpu.iota {dimensions = array<i32: 1>} : vector<8x8xi32>
    %17 = arith.cmpi sle, %16, %15 : vector<8x8xi32>
    %cst_14 = arith.constant 0xFF800000 : f32
    %18 = vector.broadcast %cst_14 : f32 to vector<8x8xf32>
    %19 = arith.select %17, %14, %18 : vector<8x8xi1>, vector<8x8xf32>
    %cst_15 = arith.constant dense<0xFF800000> : vector<8xf32>
    %20 = vector.multi_reduction <maximumf>, %19, %cst_15 [1] : vector<8x8xf32> to vector<8xf32>
    %21 = vector.shape_cast %20 : vector<8xf32> to vector<8x1xf32>
    %22 = vector.broadcast %21 : vector<8x1xf32> to vector<8x8xf32>
    %23 = arith.subf %19, %22 : vector<8x8xf32>
    %24 = math.exp %23 : vector<8x8xf32>
    %cst_16 = arith.constant dense<0.000000e+00> : vector<8xf32>
    %25 = vector.multi_reduction <add>, %24, %cst_16 [1] : vector<8x8xf32> to vector<8xf32>
    %26 = vector.shape_cast %25 : vector<8xf32> to vector<8x1xf32>
    %27 = vector.broadcast %26 : vector<8x1xf32> to vector<8x8xf32>
    %28 = arith.divf %24, %27 : vector<8x8xf32>
    %cst_17 = arith.constant dense<0.000000e+00> : vector<8x16xf32>
    %29 = tpu.matmul %28, %10, %cst_17 {dimension_numbers = #tpu.dot_dimension_numbers<[1], [0], [0], [1], [0, 0, 1, 1], [], []>} : vector<8x8xf32>, vector<8x16xf32>, vector<8x16xf32> -> vector<8x16xf32>
    %c0_18 = arith.constant 0 : index
    %c0_19 = arith.constant 0 : index
    %30 = vector.load %arg3[%c0_18, %c0_19] : memref<8x16xf32, #tpu.memory_space<vmem>>, vector<8x16xf32>
    tpu.vector_store %arg3[%c0_18, %c0_19], %29 {strides = array<i32>} : memref<8x16xf32, #tpu.memory_space<vmem>>, vector<8x16xf32>,
    return
  }
  func.func @transform_0(%arg0: i32) -> (i32, i32, i32) {
    %c0_i32 = arith.constant 0 : i32
    %c0_i32_0 = arith.constant 0 : i32
    %c0_i32_1 = arith.constant 0 : i32
    return %arg0, %c0_i32, %c0_i32_0 : i32, i32, i32
  }
  func.func @transform_1(%arg0: i32) -> (i32, i32, i32) {
    %c0_i32 = arith.constant 0 : i32
    %c0_i32_0 = arith.constant 0 : i32
    %c0_i32_1 = arith.constant 0 : i32
    %c0_i32_2 = arith.constant 0 : i32
    return %c0_i32, %c0_i32_0, %c0_i32_1 : i32, i32, i32
  }
  func.func @transform_2(%arg0: i32) -> (i32, i32) {
    %c0_i32 = arith.constant 0 : i32
    %c0_i32_0 = arith.constant 0 : i32
    return %arg0, %c0_i32 : i32, i32
  }
}

</mosaic_0001>

<llo_original>
// kernel: tpu_custom_call.1
$region0: #{tpu_custom_call.1}
  #allocation0 [shape = 'u32[]', space=smem, size = 0x4, offset = 0x4, fixed_abs, tag = 'smem constant byte address 0x4 - core index']
  #allocation1 [shape = 'u32[72,128]{1,0:T(1,128)}', space=vmem, size = 0x9000, scoped, tag = 'internal scratch']
  %s0 = inlined_call_operand.vmem [shape: f32[2,8,32], index: 0, kind: input, shape index: {}]
  %s1 = inlined_call_operand.vmem [shape: f32[3,32,16], index: 1, kind: input, shape index: {}]
  %s2 = inlined_call_operand.hbm [shape: f32[16,16], index: 2, kind: output, shape index: {}]
  %s3 = sld [smem:[#allocation0]]
  $region41: #{tpu_custom_call.1} parent=0
    _
  %s5 = ssub.s32 1, %s3
  %s6 = scalar_select 0, %s5, %s3
  $region1: #{tpu_custom_call.1} parent=0
    #allocation2 [shape = 'u8[8192]{0}', space=vmem, size = 0x2000, scoped, tag = 'output window, operand 0']
    #allocation3 [shape = 's32[2]{0}', space=sflag, size = 0x8, scoped, tag = 'scoped memory for tpu_custom_call.1']
    %7 = vsyncpa [#allocation3], 0
    %s8 = scalar_lea.sflag [#allocation3], 1
    %9 = vsyncpa %s8, 0
    loop: start=0, step=1, limit=4
    $region2: #{tpu_custom_call.1} parent=1 // loop_pre_header
      _
    $region3: #{tpu_custom_call.1} parent=1 // loop_header
      %s11 = sphi 0, %s15
      %p12 = scmp.ge.s32.totalorder %s11, 4
      %s21 = sphi 0, %s23
      %s24 = sphi 0, %s21
      %s25 = sphi 0, %s24
      %s41 = sphi 0, %s25
      %s45 = sphi 0, %s45
      %s47 = sphi 0, %s45
      %s48 = sphi 0, %s47
      %s62 = sphi 0, %s48
      %s68 = sphi 0, %s70
      %s71 = sphi 0, %s68
      %s72 = sphi 0, %s71
      %s88 = sphi 0, %s72
    $region4: #{tpu_custom_call.1} parent=1 // loop_header_branch
      %14 = sbr.rel (%p12) target = $region8
    $region5: #{tpu_custom_call.1} parent=1 // loop_body
      %s16 = ssub.s32 %s11, 1
      %s17 = ssub.s32 %s11, 2
      %s18 = sadd.s32 %s11, 1
      %s19 = ssub.s32 %s11, %s18
      %p20 = scmp.eq.s32.totalorder %s19, 0
      %s22 = sadd.s32 %s21, 1
      %s23 = scalar_select %p20, %s21, %s22
      %p26 = pneg %p20
      %p27 = scmp.eq.s32.totalorder %s11, 1
      %p28 = por %p26, %p27
      %p29 = scmp.ne.s32.totalorder %s21, %s24
      %p30 = scmp.eq.s32.totalorder %s11, 0
      %p31 = por %p29, %p30
      %p32 = scmp.ne.s32.totalorder %s21, %s24
      %p33 = scmp.eq.s32.totalorder %s16, 1
      %p34 = por %p32, %p33
      %p35 = scmp.ne.s32.totalorder %s24, %s25
      %p36 = scmp.eq.s32.totalorder %s16, 0
      %p37 = por %p35, %p36
      %p38 = scmp.ne.s32.totalorder %s24, %s25
      %p39 = scmp.eq.s32.totalorder %s17, 1
      %p40 = por %p38, %p39
      %p42 = scmp.ne.s32.totalorder %s25, %s41
      %p43 = scmp.eq.s32.totalorder %s17, 0
      %p44 = por %p42, %p43
      %s46 = sadd.s32 %s45, 1
      %p49 = scmp.eq.s32.totalorder %s11, 1
      %p50 = scmp.ne.s32.totalorder %s45, %s47
      %p51 = scmp.eq.s32.totalorder %s11, 0
      %p52 = por %p50, %p51
      %p53 = scmp.ne.s32.totalorder %s45, %s47
      %p54 = scmp.eq.s32.totalorder %s16, 1
      %p55 = por %p53, %p54
      %p56 = scmp.ne.s32.totalorder %s47, %s48
      %p57 = scmp.eq.s32.totalorder %s16, 0
      %p58 = por %p56, %p57
      %p59 = scmp.ne.s32.totalorder %s47, %s48
      %p60 = scmp.eq.s32.totalorder %s17, 1
      %p61 = por %p59, %p60
      %p63 = scmp.ne.s32.totalorder %s48, %s62
      %p64 = scmp.eq.s32.totalorder %s17, 0
      %p65 = por %p63, %p64
      %s66 = ssub.s32 %s11, %s18
      %p67 = scmp.eq.s32.totalorder %s66, 0
      %s69 = sadd.s32 %s68, 1
      %s70 = scalar_select %p67, %s68, %s69
      %p73 = pneg %p67
      %p74 = scmp.eq.s32.totalorder %s11, 1
      %p75 = por %p73, %p74
      %p76 = scmp.ne.s32.totalorder %s68, %s71
      %p77 = scmp.eq.s32.totalorder %s11, 0
      %p78 = por %p76, %p77
      %p79 = scmp.ne.s32.totalorder %s68, %s71
      %p80 = scmp.eq.s32.totalorder %s16, 1
      %p81 = por %p79, %p80
      %p82 = scmp.ne.s32.totalorder %s71, %s72
      %p83 = scmp.eq.s32.totalorder %s16, 0
      %p84 = por %p82, %p83
      %p85 = scmp.ne.s32.totalorder %s71, %s72
      %p86 = scmp.eq.s32.totalorder %s17, 1
      %p87 = por %p85, %p86
      %p89 = scmp.ne.s32.totalorder %s72, %s88
      %p90 = scmp.eq.s32.totalorder %s17, 0
      %p91 = por %p89, %p90
      %p92 = scmp.le.s32.totalorder 1, %s11
      %p93 = scmp.lt.s32.totalorder %s11, 3
      %p94 = pnand %p92, %p93
      %p95 = pneg %p94
      // Predicated region
      $region9: #{tpu_custom_call.1} parent=5 // pred_check
        _
      $region10: #{tpu_custom_call.1} parent=5 // pred_check_branch
        %97 = sbr.rel (%p94) target = $region12
      $region11: #{tpu_custom_call.1} parent=5 // pred_region
        %s98 = ssub.s32 %s11, 1
        // Predicated region
        $region13: #{tpu_custom_call.1} parent=11 // pred_check
          %p99 = pneg %p58
        $region14: #{tpu_custom_call.1} parent=11 // pred_check_branch
          %101 = sbr.rel (%p99) target = $region16
        $region15: #{tpu_custom_call.1} parent=11 // pred_region
          _
        $region16: #{tpu_custom_call.1} parent=11 // pred_fallthru
          _
      $region12: #{tpu_custom_call.1} parent=5 // pred_fallthru
        _
      %p102 = scmp.lt.s32.totalorder %s11, 2
      // Predicated region
      $region17: #{tpu_custom_call.1} parent=5 // pred_check
        %p103 = pneg %p102
      $region18: #{tpu_custom_call.1} parent=5 // pred_check_branch
        %105 = sbr.rel (%p103) target = $region20
      $region19: #{tpu_custom_call.1} parent=5 // pred_region
        // Predicated region
        $region21: #{tpu_custom_call.1} parent=19 // pred_check
          %p106 = pneg %p31
        $region22: #{tpu_custom_call.1} parent=19 // pred_check_branch
          %108 = sbr.rel (%p106) target = $region24
        $region23: #{tpu_custom_call.1} parent=19 // pred_region
          %p109 = scmp.lt.s32.totalorder %s11, 1
          %s110 = scalar_select %p109, %s11, 1
          %s111 = smul.addr %s110, 8
          %s112 = scalar_lea.vmem %s0, %s111
        $region24: #{tpu_custom_call.1} parent=19 // pred_fallthru
          _
      $region20: #{tpu_custom_call.1} parent=5 // pred_fallthru
        _
      %p113 = scmp.le.s32.totalorder 1, %s11
      %p114 = scmp.lt.s32.totalorder %s11, 3
      %p115 = pnand %p113, %p114
      %p116 = pneg %p115
      // Predicated region
      $region25: #{tpu_custom_call.1} parent=5 // pred_check
        _
      $region26: #{tpu_custom_call.1} parent=5 // pred_check_branch
        %118 = sbr.rel (%p115) target = $region28
      $region27: #{tpu_custom_call.1} parent=5 // pred_region
        %s119 = ssub.s32 %s11, 1
        %p120 = scmp.lt.s32.totalorder %s16, 1
        %s121 = scalar_select %p120, %s16, 1
        %s122 = smul.addr %s121, 8
        %s123 = scalar_lea.vmem %s0, %s122
        %p124 = pneg %p37
        %p125 = pneg %p34
        %p126 = pneg %p58
        %p127 = pneg %p55
        %p128 = pneg %p84
        %p129 = pneg %p81
        %s130 = sand.u32 %s71, 1
        %s131 = scalar_lea.sflag [#allocation3], %s130
        %s132 = sand.u32 %s71, 1
        %s133 = smul.addr %s132, 8
        %s134 = scalar_lea.vmem [#allocation2], %s133
        %p135 = scmp.lt.s32.totalorder %s16, 1
        %s136 = scalar_select %p135, %s16, 1
        %s137 = smul.addr %s136, 8
        %s138 = scalar_lea.vmem %s0, %s137
        %v139 = vld [vmem:[%s138] sm:$0xff]
        %v140 = vld [vmem:[%s1] sm:$0xff]
        %v141 = vld [vmem:[%s1 + $0x8] sm:$0xff]
        %v142 = vld [vmem:[%s1 + $0x10] sm:$0xff]
        %v143 = vld [vmem:[%s1 + $0x18] sm:$0xff]
        %vm144 = vcmask 261120
        %v146 = vsel %vm144, %v139, 0
        %148 = vmatpush.msra.mxu0 0.0
        %149 = vmatpush.msra.mxu0 0.0
        %150 = vmatpush.msra.mxu0 0.0
        %151 = vmatpush.msra.mxu0 0.0
        %152 = vmatpush.msra.mxu0 0.0
        %153 = vmatpush.msra.mxu0 0.0
        %154 = vmatpush.msra.mxu0 0.0
        %155 = vmatpush.msra.mxu0 0.0
        %156 = vmatpush.msra.mxu0 0.0
        %157 = vmatpush.msra.mxu0 0.0
        %158 = vmatpush.msra.mxu0 0.0
        %159 = vmatpush.msra.mxu0 0.0
        %160 = vmatpush.msra.mxu0 %v143
        %161 = vmatpush.msra.mxu0 %v142
        %162 = vmatpush.msra.mxu0 %v141
        %163 = vmatpush.msra.mxu0 %v140
        %164 = vmatmul.f32.gmra.mxu0 %v146
        %v165 = vpop.f32.mrf.mxu0
        %v166 = vadd.f32 0.0, %v165
        %167 = vdwg.mxu0
        %s168 = scalar_lea.vmem %s1, 32
        %v169 = vld [vmem:[%s168] sm:$0xff]
        %v170 = vld [vmem:[%s168 + $0x8] sm:$0xff]
        %v171 = vld [vmem:[%s168 + $0x10] sm:$0xff]
        %v172 = vld [vmem:[%s168 + $0x18] sm:$0xff]
        %173 = vmatpush.msra.mxu0 0.0
        %174 = vmatpush.msra.mxu0 0.0
        %175 = vmatpush.msra.mxu0 0.0
        %176 = vmatpush.msra.mxu0 0.0
        %177 = vmatpush.msra.mxu0 0.0
        %178 = vmatpush.msra.mxu0 0.0
        %179 = vmatpush.msra.mxu0 0.0
        %180 = vmatpush.msra.mxu0 0.0
        %181 = vmatpush.msra.mxu0 0.0
        %182 = vmatpush.msra.mxu0 0.0
        %183 = vmatpush.msra.mxu0 0.0
        %184 = vmatpush.msra.mxu0 0.0
        %185 = vmatpush.msra.mxu0 %v172
        %186 = vmatpush.msra.mxu0 %v171
        %187 = vmatpush.msra.mxu0 %v170
        %188 = vmatpush.msra.mxu0 %v169
        %189 = vmatmul.f32.gmra.mxu0 %v146
        %v190 = vpop.f32.mrf.mxu0
        %v191 = vadd.f32 0.0, %v190
        %192 = vdwg.mxu0
        %s193 = scalar_lea.vmem %s1, 64
        %v194 = vld [vmem:[%s193] sm:$0xff]
        %v195 = vld [vmem:[%s193 + $0x8] sm:$0xff]
        %v196 = vld [vmem:[%s193 + $0x10] sm:$0xff]
        %v197 = vld [vmem:[%s193 + $0x18] sm:$0xff]
        %198 = vmatpush.msra.mxu0 0.0
        %199 = vmatpush.msra.mxu0 0.0
        %200 = vmatpush.msra.mxu0 0.0
        %201 = vmatpush.msra.mxu0 0.0
        %202 = vmatpush.msra.mxu0 0.0
        %203 = vmatpush.msra.mxu0 0.0
        %204 = vmatpush.msra.mxu0 0.0
        %205 = vmatpush.msra.mxu0 0.0
        %206 = vmatpush.msra.mxu0 0.0
        %207 = vmatpush.msra.mxu0 0.0
        %208 = vmatpush.msra.mxu0 0.0
        %209 = vmatpush.msra.mxu0 0.0
        %210 = vmatpush.msra.mxu0 %v197
        %211 = vmatpush.msra.mxu0 %v196
        %212 = vmatpush.msra.mxu0 %v195
        %213 = vmatpush.msra.mxu0 %v194
        %214 = vmatmul.f32.gmra.mxu0 %v146
        %v215 = vpop.f32.mrf.mxu0
        %v216 = vadd.f32 0.0, %v215
        %217 = vdwg.mxu0
        %v218 = vmul.f32 %v166, 0.17677669
        %vm219 = vcmask 130048
        %v221 = vsel %vm219, %v218, 0
        %v224 = vsel %vm219, %v191, 0
        %226 = vmatpush.xpose.msra.mxu0 0.0
        %227 = vmatpush.xpose.msra.mxu0 0.0
        %228 = vmatpush.xpose.msra.mxu0 0.0
        %229 = vmatpush.xpose.msra.mxu0 0.0
        %230 = vmatpush.xpose.msra.mxu0 0.0
        %231 = vmatpush.xpose.msra.mxu0 0.0
        %232 = vmatpush.xpose.msra.mxu0 0.0
        %233 = vmatpush.xpose.msra.mxu0 0.0
        %234 = vmatpush.xpose.msra.mxu0 0.0
        %235 = vmatpush.xpose.msra.mxu0 0.0
        %236 = vmatpush.xpose.msra.mxu0 0.0
        %237 = vmatpush.xpose.msra.mxu0 0.0
        %238 = vmatpush.xpose.msra.mxu0 0.0
        %239 = vmatpush.xpose.msra.mxu0 0.0
        %240 = vmatpush.xpose.msra.mxu0 0.0
        %241 = vmatpush.xpose.msra.mxu0 %v224
        %242 = vmatmul.f32.gmra.mxu0 %v221
        %v243 = vpop.f32.mrf.mxu0
        %v244 = vadd.f32 0.0, %v243
        %245 = vdwg.mxu0
        %v246 = vlaneseq
        %v247 = vshrl.u32 %v246, 7
        %v248 = vlaneseq
        %v249 = vand.u32 %v248, 127
        %vm250 = vcmp.le.s32.totalorder %v249, %v247
        %v251 = vsel %vm250, %v244, -inf
        %vm252 = vcmask 64512
        %v253 = vsel %vm252, %v251, -inf
        %254 = vmax.xlane.f32.xlu0 %v253
        %v255 = vpop.xlane.xlu0 %254
        %v256 = vsub.f32 %v251, %v255
        %v257 = vmul.f32 %v256, 1.442695
        %v258 = vpow.pop %v257
        %v259 = vsel %vm252, %v258, 0.0
        %260 = vadd.xlane.f32.xlu0 %v259
        %v261 = vpop.xlane.xlu0 %260
        %v262 = vrcp.pop %v261
        %v263 = vmul.f32 %v261, %v262
        %v264 = vsub.f32 1.0, %v263
        %v265 = vmul.f32 %v262, %v264
        %v266 = vadd.f32 %v262, %v265
        %vm267 = vweird.f32 %v261
        %vm268 = vweird.f32 %v262
        %vm269 = vmor %vm267, %vm268
        %v270 = vsel %vm269, %v262, %v266
        %v271 = vand.u32 2147483647, %v261
        %vm272 = vcmp.eq.f32.partialorder %v271, 8.507059e+37
        %v273 = vand.u32 %v261, 2147483648
        %v274 = vor.u32 1.1754944e-38, %v273
        %v275 = vsel %vm272, %v274, %v270
        %v276 = vmul.f32 %v258, %v275
        %v278 = vsel %vm252, %v276, 0
        %280 = vmatpush.msra.mxu0 0.0
        %281 = vmatpush.msra.mxu0 0.0
        %282 = vmatpush.msra.mxu0 0.0
        %283 = vmatpush.msra.mxu0 0.0
        %284 = vmatpush.msra.mxu0 0.0
        %285 = vmatpush.msra.mxu0 0.0
        %286 = vmatpush.msra.mxu0 0.0
        %287 = vmatpush.msra.mxu0 0.0
        %288 = vmatpush.msra.mxu0 0.0
        %289 = vmatpush.msra.mxu0 0.0
        %290 = vmatpush.msra.mxu0 0.0
        %291 = vmatpush.msra.mxu0 0.0
        %292 = vmatpush.msra.mxu0 0.0
        %293 = vmatpush.msra.mxu0 0.0
        %294 = vmatpush.msra.mxu0 0.0
        %295 = vmatpush.msra.mxu0 %v216
        %296 = vmatmul.f32.gmra.mxu0 %v278
        %v297 = vpop.f32.mrf.mxu0
        %v298 = vadd.f32 0.0, %v297
        %299 = vdwg.mxu0
        %300 = vst.msk [vmem:[%s134] sm:$0xff] %vm219, %v298
        %s301 = sand.u32 %s71, 1
        %s302 = scalar_lea.sflag [#allocation3], %s301
        %s303 = sand.u32 %s71, 1
        %s304 = smul.addr %s303, 8
        %s305 = scalar_lea.vmem [#allocation2], %s304
        // Predicated region
        $region29: #{tpu_custom_call.1} parent=27 // pred_check
          %p306 = pneg %p81
        $region30: #{tpu_custom_call.1} parent=27 // pred_check_branch
          %308 = sbr.rel (%p306) target = $region32
        $region31: #{tpu_custom_call.1} parent=27 // pred_region
          %310 = vsyncadd %s302, 0
          %s311 = smul.addr %s16, 8
          %s312 = scalar_lea.hbm %s2, %s311
          %s314 = sshll.u32 %s305, 4
          %s315 = int_to_ptr.vmem [resolvable:$true] %s314
          %s316 = sshll.u32 %s312, 4
          %s317 = int_to_ptr.hbm [resolvable:$true] %s316
          %319 = dma.vmem_to_hbm [thread:$0]  %s315, 128, %s317, %s302
        $region32: #{tpu_custom_call.1} parent=27 // pred_fallthru
          _
      $region28: #{tpu_custom_call.1} parent=5 // pred_fallthru
        _
      %p320 = scmp.le.s32.totalorder 2, %s11
      // Predicated region
      $region33: #{tpu_custom_call.1} parent=5 // pred_check
        %p321 = pneg %p320
      $region34: #{tpu_custom_call.1} parent=5 // pred_check_branch
        %323 = sbr.rel (%p321) target = $region36
      $region35: #{tpu_custom_call.1} parent=5 // pred_region
        %s324 = ssub.s32 %s11, 2
        // Predicated region
        $region37: #{tpu_custom_call.1} parent=35 // pred_check
          %p325 = pneg %p87
        $region38: #{tpu_custom_call.1} parent=35 // pred_check_branch
          %327 = sbr.rel (%p325) target = $region40
        $region39: #{tpu_custom_call.1} parent=35 // pred_region
          %s328 = sand.u32 %s72, 1
          %s329 = scalar_lea.sflag [#allocation3], %s328
          %s330 = sand.u32 %s72, 1
          %s331 = smul.addr %s330, 8
          %s332 = scalar_lea.vmem [#allocation2], %s331
          %334 = dma.done %s329, 128
        $region40: #{tpu_custom_call.1} parent=35 // pred_fallthru
          _
      $region36: #{tpu_custom_call.1} parent=5 // pred_fallthru
        _
    $region6: #{tpu_custom_call.1} parent=1 // loop_footer
      %s15 = sadd.s32 1, %s11
    $region7: #{tpu_custom_call.1} parent=1 // loop_footer_branch
      %10 = sbr.rel target = $region3
    $region8: #{tpu_custom_call.1} parent=1 // loop_exit
      _
    %335 = vsyncpa [#allocation3], 1
    %s336 = scalar_lea.sflag [#allocation3], 1
    %337 = vsyncpa %s336, 1

</llo_original>
